<compile_context>
chip_gen: v7x
topology: tpu7x:2x2x1
jax: 0.10.0
libtpu: 0.0.40
codegen_flags: <defaults>
</compile_context>

<pallas_src>
import functools

import jax
import jax.numpy as jnp
from jax import lax
from jax.experimental import pallas as pl
from jax.experimental.pallas import tpu as pltpu


def _fused_mha_kernel(x_ref, wqkv_ref, wo_ref, o_ref, *, S, D, H, Dh, scale):
    HD = H * Dh
    x = x_ref[0]                   # (S, D)      bf16
    wqkv = wqkv_ref[...]           # (3*HD, D)   bf16
    wo = wo_ref[...]               # (D, D)      bf16

    # x @ W^T (contract x's embed dim with the weight's in_features dim)
    cn = (((1,), (1,)), ((), ()))

    # --- fused QKV projection: one MXU pass, 3*HD-lane output, f32 accumulate ---
    qkv = lax.dot_general(x, wqkv, cn, preferred_element_type=jnp.float32)  # (S, 3*HD)

    # Fold the softmax scale into q once (instead of scaling every score tile).
    q = (qkv[:, 0 * HD:1 * HD] * scale).astype(jnp.bfloat16)   # (S, HD)
    k = qkv[:, 1 * HD:2 * HD].astype(jnp.bfloat16)             # (S, HD)
    v = qkv[:, 2 * HD:3 * HD].astype(jnp.bfloat16)             # (S, HD)

    # --- head split: (S, H*Dh) -> (H, S, Dh); pure layout (static slices + stack) ---
    def split_heads(t):
        return jnp.stack([t[:, h * Dh:(h + 1) * Dh] for h in range(H)], axis=0)

    q3, k3, v3 = split_heads(q), split_heads(k), split_heads(v)  # (H, S, Dh) bf16

    # --- head-batched scores + causal mask + f32 softmax (normalization deferred) ---
    s = jnp.einsum("hqd,hkd->hqk", q3, k3,
                   preferred_element_type=jnp.float32)           # (H, S, S) f32
    row = lax.broadcasted_iota(jnp.int32, (S, S), 0)
    col = lax.broadcasted_iota(jnp.int32, (S, S), 1)
    s = jnp.where((col <= row)[None, :, :], s, -1e30)            # finite mask value

    m = jnp.max(s, axis=-1, keepdims=True)                       # (H, S, 1)
    p = jnp.exp(s - m)                                           # unnormalized probs
    l = jnp.sum(p, axis=-1, keepdims=True)                       # (H, S, 1)

    o_h = jnp.einsum("hqk,hkd->hqd", p.astype(jnp.bfloat16), v3,
                     preferred_element_type=jnp.float32)         # (H, S, Dh) f32
    o_h = o_h * pl.reciprocal(l, approx=True)                    # normalize on the EUP

    # --- head merge: (H, S, Dh) -> (S, H*Dh); pure layout (index + lane concat) ---
    attn = jnp.concatenate([o_h[h] for h in range(H)], axis=-1)  # (S, HD) f32

    # --- output projection ---
    out = lax.dot_general(attn.astype(jnp.bfloat16), wo, cn,
                          preferred_element_type=jnp.float32)    # (S, D) f32

    # --- lane-dense store: pack (S, D) rows into one (1, S*D) row (full-width vst) ---
    o_ref[0] = jnp.concatenate([out[i:i + 1, :] for i in range(S)],
                               axis=-1).astype(o_ref.dtype)      # (1, S*D)


def fused_mha(x, wq, wk, wv, wo, *, num_heads, head_dim):
    B, S, D = x.shape
    HD = num_heads * head_dim
    assert HD == D, "output_proj requires num_heads * head_dim == embed_dim"

    # One-time weight prep (done once at load time in a real model): fuse q/k/v
    # into a single (3*HD, D) matrix and cast all MXU operands to bf16.
    w_qkv = jnp.concatenate([wq, wk, wv], axis=0).astype(jnp.bfloat16)  # (3*HD, D)
    wo_bf = wo.astype(jnp.bfloat16)
    x_bf = x.astype(jnp.bfloat16)

    kernel = functools.partial(_fused_mha_kernel, S=S, D=D, H=num_heads,
                               Dh=head_dim, scale=1.0 / (head_dim ** 0.5))

    out = pl.pallas_call(
        kernel,
        # lane-dense output layout: (B, 1, S*D); reshaped back to (B, S, D) below.
        out_shape=jax.ShapeDtypeStruct((B, 1, S * D), x.dtype),
        grid_spec=pltpu.PrefetchScalarGridSpec(
            num_scalar_prefetch=0,
            grid=(B,),   # 2 "parallel" steps -> keeps both TensorCores busy on v7x
            in_specs=[
                pl.BlockSpec((1, S, D), lambda b: (b, 0, 0)),
                # Weights are a few KiB in bf16 and fully VMEM-resident here.
                # At realistic D, use pipeline_mode=pl.Buffered(1) (or pl.ANY +
                # one manual copy) to avoid double-buffering them on v7x's
                # 64 MiB VMEM, and add a K-tiled grid axis for the projections.
                pl.BlockSpec((3 * HD, D), lambda b: (0, 0)),
                pl.BlockSpec((D, D), lambda b: (0, 0)),
            ],
            out_specs=pl.BlockSpec((1, 1, S * D), lambda b: (b, 0, 0)),
        ),
        compiler_params=pltpu.CompilerParams(dimension_semantics=("parallel",)),
    )(x_bf, w_qkv, wo_bf)
    return out.reshape(B, S, D)


def _reference_mha(x, wq, wk, wv, wo, num_heads, head_dim):
    """Pure-JAX (f32) mirror of the PyTorch forward (causal SDPA)."""
    B, S, D = x.shape
    q = (x @ wq.T).reshape(B, S, num_heads, head_dim).transpose(0, 2, 1, 3)
    k = (x @ wk.T).reshape(B, S, num_heads, head_dim).transpose(0, 2, 1, 3)
    v = (x @ wv.T).reshape(B, S, num_heads, head_dim).transpose(0, 2, 1, 3)
    scale = 1.0 / (head_dim ** 0.5)
    s = jnp.einsum("bhqd,bhkd->bhqk", q, k) * scale
    mask = jnp.tril(jnp.ones((S, S), dtype=bool))
    s = jnp.where(mask, s, -jnp.inf)
    p = jax.nn.softmax(s, axis=-1)
    o = jnp.einsum("bhqk,bhkd->bhqd", p, v)
    o = o.transpose(0, 2, 1, 3).reshape(B, S, D)
    return o @ wo.T


if __name__ == "__main__":
    # Module config: embed_dim=32, num_heads=4, num_kv_heads=4, head_dim=8
    B, S, D = 2, 8, 32
    H, Dh = 4, 8

    key = jax.random.PRNGKey(0)
    kx, kq, kk, kv, ko = jax.random.split(key, 5)
    x = jax.random.normal(kx, (B, S, D), dtype=jnp.float32)
    # Deterministic synthetic weights (nn.Linear shape: (out_features, in_features)).
    wq = jax.random.normal(kq, (H * Dh, D), dtype=jnp.float32) * 0.05
    wk = jax.random.normal(kk, (H * Dh, D), dtype=jnp.float32) * 0.05
    wv = jax.random.normal(kv, (H * Dh, D), dtype=jnp.float32) * 0.05
    wo = jax.random.normal(ko, (D, D), dtype=jnp.float32) * 0.05

    out = fused_mha(x, wq, wk, wv, wo, num_heads=H, head_dim=Dh)
    out = jax.block_until_ready(out)

    ref = _reference_mha(x, wq, wk, wv, wo, H, Dh)
    assert out.shape == (B, S, D)
    # bf16 MXU operands + approx reciprocal -> modest but meaningful tolerance.
    err = jnp.max(jnp.abs(out - ref))
    assert jnp.allclose(out, ref, atol=2e-2, rtol=2e-2), f"mismatch vs reference, max abs err {err}"

    # TODO(synk): kv_cache streaming-decode path, pos_embeddings, q/k norm, gating,
    # postnorm and ShortConvolution branches are disabled in this config and not ported.
    print("KERNEL_OK")
</pallas_src>

<mosaic_0001>
module attributes {stable_mosaic.version = 11 : i64} {
  func.func @_fused_mha_kernel(%arg0: i32, %arg1: memref<1x8x32xbf16, #tpu.memory_space<vmem>>, %arg2: memref<96x32xbf16, #tpu.memory_space<vmem>>, %arg3: memref<32x32xbf16, #tpu.memory_space<vmem>>, %arg4: memref<1x1x256xf32, #tpu.memory_space<vmem>>) attributes {dimension_semantics = [#tpu.dimension_semantics<parallel>], iteration_bounds = array<i64: 2>, scalar_prefetch = 0 : i64, scratch_operands = 0 : i64, tpu.core_type = #tpu.core_type<tc>, window_params = [{transform_indices = @transform_0, window_bounds = array<i64: 1, 8, 32>}, {pipeline_mode = #tpu.pipeline_mode<synchronous>, transform_indices = @transform_1, window_bounds = array<i64: 96, 32>}, {pipeline_mode = #tpu.pipeline_mode<synchronous>, transform_indices = @transform_2, window_bounds = array<i64: 32, 32>}, {transform_indices = @transform_3, window_bounds = array<i64: 1, 1, 256>}]} {
    %c0 = arith.constant 0 : index
    %c0_0 = arith.constant 0 : index
    %c0_1 = arith.constant 0 : index
    %0 = vector.load %arg1[%c0, %c0_0, %c0_1] : memref<1x8x32xbf16, #tpu.memory_space<vmem>>, vector<1x8x32xbf16>
    %1 = vector.shape_cast %0 : vector<1x8x32xbf16> to vector<8x32xbf16>
    %c0_2 = arith.constant 0 : index
    %c0_3 = arith.constant 0 : index
    %2 = vector.load %arg2[%c0_2, %c0_3] : memref<96x32xbf16, #tpu.memory_space<vmem>>, vector<96x32xbf16>
    %c0_4 = arith.constant 0 : index
    %c0_5 = arith.constant 0 : index
    %3 = vector.load %arg3[%c0_4, %c0_5] : memref<32x32xbf16, #tpu.memory_space<vmem>>, vector<32x32xbf16>
    %cst = arith.constant dense<0.000000e+00> : vector<8x96xf32>
    %4 = tpu.matmul %1, %2, %cst {dimension_numbers = #tpu.dot_dimension_numbers<[1], [1], [0], [0], [0, 0, 1, 0], [], []>} : vector<8x32xbf16>, vector<96x32xbf16>, vector<8x96xf32> -> vector<8x96xf32>
    %5 = vector.extract_strided_slice %4 {offsets = [0, 0], sizes = [8, 32], strides = [1, 1]} : vector<8x96xf32> to vector<8x32xf32>
    %cst_6 = arith.constant 0.353553385 : f32
    %6 = vector.broadcast %cst_6 : f32 to vector<8x32xf32>
    %7 = arith.mulf %5, %6 : vector<8x32xf32>
    %8 = arith.truncf %7 : vector<8x32xf32> to vector<8x32xbf16>
    %9 = vector.extract_strided_slice %4 {offsets = [0, 32], sizes = [8, 32], strides = [1, 1]} : vector<8x96xf32> to vector<8x32xf32>
    %10 = arith.truncf %9 : vector<8x32xf32> to vector<8x32xbf16>
    %11 = vector.extract_strided_slice %4 {offsets = [0, 64], sizes = [8, 32], strides = [1, 1]} : vector<8x96xf32> to vector<8x32xf32>
    %12 = arith.truncf %11 : vector<8x32xf32> to vector<8x32xbf16>
    %13 = vector.extract_strided_slice %8 {offsets = [0, 0], sizes = [8, 8], strides = [1, 1]} : vector<8x32xbf16> to vector<8x8xbf16>
    %14 = vector.extract_strided_slice %8 {offsets = [0, 8], sizes = [8, 8], strides = [1, 1]} : vector<8x32xbf16> to vector<8x8xbf16>
    %15 = vector.extract_strided_slice %8 {offsets = [0, 16], sizes = [8, 8], strides = [1, 1]} : vector<8x32xbf16> to vector<8x8xbf16>
    %16 = vector.extract_strided_slice %8 {offsets = [0, 24], sizes = [8, 8], strides = [1, 1]} : vector<8x32xbf16> to vector<8x8xbf16>
    %17 = vector.shape_cast %13 : vector<8x8xbf16> to vector<1x8x8xbf16>
    %18 = vector.shape_cast %14 : vector<8x8xbf16> to vector<1x8x8xbf16>
    %19 = vector.shape_cast %15 : vector<8x8xbf16> to vector<1x8x8xbf16>
    %20 = vector.shape_cast %16 : vector<8x8xbf16> to vector<1x8x8xbf16>
    %21 = tpu.concatenate %17, %18, %19, %20 in 0 : vector<1x8x8xbf16>, vector<1x8x8xbf16>, vector<1x8x8xbf16>, vector<1x8x8xbf16> -> vector<4x8x8xbf16>
    %22 = vector.extract_strided_slice %10 {offsets = [0, 0], sizes = [8, 8], strides = [1, 1]} : vector<8x32xbf16> to vector<8x8xbf16>
    %23 = vector.extract_strided_slice %10 {offsets = [0, 8], sizes = [8, 8], strides = [1, 1]} : vector<8x32xbf16> to vector<8x8xbf16>
    %24 = vector.extract_strided_slice %10 {offsets = [0, 16], sizes = [8, 8], strides = [1, 1]} : vector<8x32xbf16> to vector<8x8xbf16>
    %25 = vector.extract_strided_slice %10 {offsets = [0, 24], sizes = [8, 8], strides = [1, 1]} : vector<8x32xbf16> to vector<8x8xbf16>
    %26 = vector.shape_cast %22 : vector<8x8xbf16> to vector<1x8x8xbf16>
    %27 = vector.shape_cast %23 : vector<8x8xbf16> to vector<1x8x8xbf16>
    %28 = vector.shape_cast %24 : vector<8x8xbf16> to vector<1x8x8xbf16>
    %29 = vector.shape_cast %25 : vector<8x8xbf16> to vector<1x8x8xbf16>
    %30 = tpu.concatenate %26, %27, %28, %29 in 0 : vector<1x8x8xbf16>, vector<1x8x8xbf16>, vector<1x8x8xbf16>, vector<1x8x8xbf16> -> vector<4x8x8xbf16>
    %31 = vector.extract_strided_slice %12 {offsets = [0, 0], sizes = [8, 8], strides = [1, 1]} : vector<8x32xbf16> to vector<8x8xbf16>
    %32 = vector.extract_strided_slice %12 {offsets = [0, 8], sizes = [8, 8], strides = [1, 1]} : vector<8x32xbf16> to vector<8x8xbf16>
    %33 = vector.extract_strided_slice %12 {offsets = [0, 16], sizes = [8, 8], strides = [1, 1]} : vector<8x32xbf16> to vector<8x8xbf16>
    %34 = vector.extract_strided_slice %12 {offsets = [0, 24], sizes = [8, 8], strides = [1, 1]} : vector<8x32xbf16> to vector<8x8xbf16>
    %35 = vector.shape_cast %31 : vector<8x8xbf16> to vector<1x8x8xbf16>
    %36 = vector.shape_cast %32 : vector<8x8xbf16> to vector<1x8x8xbf16>
    %37 = vector.shape_cast %33 : vector<8x8xbf16> to vector<1x8x8xbf16>
    %38 = vector.shape_cast %34 : vector<8x8xbf16> to vector<1x8x8xbf16>
    %39 = tpu.concatenate %35, %36, %37, %38 in 0 : vector<1x8x8xbf16>, vector<1x8x8xbf16>, vector<1x8x8xbf16>, vector<1x8x8xbf16> -> vector<4x8x8xbf16>
    "tpu.trace_start"() <{level = 10 : i32, message = "hqd,hkd->hqk"}> : () -> ()
    %cst_7 = arith.constant dense<0.000000e+00> : vector<4x8x8xf32>
    %40 = tpu.matmul %21, %30, %cst_7 {dimension_numbers = #tpu.dot_dimension_numbers<[2], [2], [1], [1], [0, 0, 0, 1, 1, 1], [0], [0]>} : vector<4x8x8xbf16>, vector<4x8x8xbf16>, vector<4x8x8xf32> -> vector<4x8x8xf32>
    "tpu.trace_stop"() : () -> ()
    %41 = tpu.iota {dimensions = array<i32: 0>} : vector<8x8xi32>
    %42 = tpu.iota {dimensions = array<i32: 1>} : vector<8x8xi32>
    %43 = arith.cmpi sle, %42, %41 : vector<8x8xi32>
    %44 = vector.shape_cast %43 : vector<8x8xi1> to vector<1x8x8xi1>
    %cst_8 = arith.constant -1.000000e+30 : f32
    %45 = vector.shape_cast %44 : vector<1x8x8xi1> to vector<1x8x8xi1>
    %46 = vector.broadcast %45 : vector<1x8x8xi1> to vector<4x8x8xi1>
    %47 = vector.broadcast %cst_8 : f32 to vector<4x8x8xf32>
    %48 = arith.select %46, %40, %47 : vector<4x8x8xi1>, vector<4x8x8xf32>
    %cst_9 = arith.constant dense<0xFF800000> : vector<4x8xf32>
    %49 = vector.multi_reduction <maximumf>, %48, %cst_9 [2] : vector<4x8x8xf32> to vector<4x8xf32>
    %50 = vector.shape_cast %49 : vector<4x8xf32> to vector<4x8x1xf32>
    %51 = vector.broadcast %50 : vector<4x8x1xf32> to vector<4x8x8xf32>
    %52 = arith.subf %48, %51 : vector<4x8x8xf32>
    %53 = math.exp %52 : vector<4x8x8xf32>
    %cst_10 = arith.constant dense<0.000000e+00> : vector<4x8xf32>
    %54 = vector.multi_reduction <add>, %53, %cst_10 [2] : vector<4x8x8xf32> to vector<4x8xf32>
    %55 = vector.shape_cast %54 : vector<4x8xf32> to vector<4x8x1xf32>
    %56 = arith.truncf %53 : vector<4x8x8xf32> to vector<4x8x8xbf16>
    "tpu.trace_start"() <{level = 10 : i32, message = "hqk,hkd->hqd"}> : () -> ()
    %cst_11 = arith.constant dense<0.000000e+00> : vector<4x8x8xf32>
    %57 = tpu.matmul %56, %39, %cst_11 {dimension_numbers = #tpu.dot_dimension_numbers<[2], [1], [1], [2], [0, 0, 0, 1, 1, 2], [0], [0]>} : vector<4x8x8xbf16>, vector<4x8x8xbf16>, vector<4x8x8xf32> -> vector<4x8x8xf32>
    "tpu.trace_stop"() : () -> ()
    %58 = tpu.reciprocal %55 {approx = true} : vector<4x8x1xf32> -> vector<4x8x1xf32>
    %59 = vector.broadcast %58 : vector<4x8x1xf32> to vector<4x8x8xf32>
    %60 = arith.mulf %57, %59 : vector<4x8x8xf32>
    %61 = vector.extract_strided_slice %60 {offsets = [0, 0, 0], sizes = [1, 8, 8], strides = [1, 1, 1]} : vector<4x8x8xf32> to vector<1x8x8xf32>
    %62 = vector.shape_cast %61 : vector<1x8x8xf32> to vector<8x8xf32>
    %63 = vector.extract_strided_slice %60 {offsets = [1, 0, 0], sizes = [1, 8, 8], strides = [1, 1, 1]} : vector<4x8x8xf32> to vector<1x8x8xf32>
    %64 = vector.shape_cast %63 : vector<1x8x8xf32> to vector<8x8xf32>
    %65 = vector.extract_strided_slice %60 {offsets = [2, 0, 0], sizes = [1, 8, 8], strides = [1, 1, 1]} : vector<4x8x8xf32> to vector<1x8x8xf32>
    %66 = vector.shape_cast %65 : vector<1x8x8xf32> to vector<8x8xf32>
    %67 = vector.extract_strided_slice %60 {offsets = [3, 0, 0], sizes = [1, 8, 8], strides = [1, 1, 1]} : vector<4x8x8xf32> to vector<1x8x8xf32>
    %68 = vector.shape_cast %67 : vector<1x8x8xf32> to vector<8x8xf32>
    %69 = tpu.concatenate %62, %64, %66, %68 in 1 : vector<8x8xf32>, vector<8x8xf32>, vector<8x8xf32>, vector<8x8xf32> -> vector<8x32xf32>
    %70 = arith.truncf %69 : vector<8x32xf32> to vector<8x32xbf16>
    %cst_12 = arith.constant dense<0.000000e+00> : vector<8x32xf32>
    %71 = tpu.matmul %70, %3, %cst_12 {dimension_numbers = #tpu.dot_dimension_numbers<[1], [1], [0], [0], [0, 0, 1, 0], [], []>} : vector<8x32xbf16>, vector<32x32xbf16>, vector<8x32xf32> -> vector<8x32xf32>
    %72 = vector.extract_strided_slice %71 {offsets = [0, 0], sizes = [1, 32], strides = [1, 1]} : vector<8x32xf32> to vector<1x32xf32>
    %73 = vector.extract_strided_slice %71 {offsets = [1, 0], sizes = [1, 32], strides = [1, 1]} : vector<8x32xf32> to vector<1x32xf32>
    %74 = vector.extract_strided_slice %71 {offsets = [2, 0], sizes = [1, 32], strides = [1, 1]} : vector<8x32xf32> to vector<1x32xf32>
    %75 = vector.extract_strided_slice %71 {offsets = [3, 0], sizes = [1, 32], strides = [1, 1]} : vector<8x32xf32> to vector<1x32xf32>
    %76 = vector.extract_strided_slice %71 {offsets = [4, 0], sizes = [1, 32], strides = [1, 1]} : vector<8x32xf32> to vector<1x32xf32>
    %77 = vector.extract_strided_slice %71 {offsets = [5, 0], sizes = [1, 32], strides = [1, 1]} : vector<8x32xf32> to vector<1x32xf32>
    %78 = vector.extract_strided_slice %71 {offsets = [6, 0], sizes = [1, 32], strides = [1, 1]} : vector<8x32xf32> to vector<1x32xf32>
    %79 = vector.extract_strided_slice %71 {offsets = [7, 0], sizes = [1, 32], strides = [1, 1]} : vector<8x32xf32> to vector<1x32xf32>
    %80 = tpu.concatenate %72, %73, %74, %75, %76, %77, %78, %79 in 1 : vector<1x32xf32>, vector<1x32xf32>, vector<1x32xf32>, vector<1x32xf32>, vector<1x32xf32>, vector<1x32xf32>, vector<1x32xf32>, vector<1x32xf32> -> vector<1x256xf32>
    %c0_13 = arith.constant 0 : index
    %c0_14 = arith.constant 0 : index
    %c0_15 = arith.constant 0 : index
    %81 = vector.load %arg4[%c0_13, %c0_14, %c0_15] : memref<1x1x256xf32, #tpu.memory_space<vmem>>, vector<1x1x256xf32>
    %82 = vector.shape_cast %81 : vector<1x1x256xf32> to vector<1x256xf32>
    %83 = vector.shape_cast %80 : vector<1x256xf32> to vector<1x1x256xf32>
    tpu.vector_store %arg4[%c0_13, %c0_14, %c0_15], %83 {strides = array<i32>} : memref<1x1x256xf32, #tpu.memory_space<vmem>>, vector<1x1x256xf32>,
    return
  }
  func.func @transform_0(%arg0: i32) -> (i32, i32, i32) {
    %c0_i32 = arith.constant 0 : i32
    %c0_i32_0 = arith.constant 0 : i32
    %c0_i32_1 = arith.constant 0 : i32
    return %arg0, %c0_i32, %c0_i32_0 : i32, i32, i32
  }
  func.func @transform_1(%arg0: i32) -> (i32, i32) {
    %c0_i32 = arith.constant 0 : i32
    %c0_i32_0 = arith.constant 0 : i32
    %c0_i32_1 = arith.constant 0 : i32
    return %c0_i32, %c0_i32_0 : i32, i32
  }
  func.func @transform_2(%arg0: i32) -> (i32, i32) {
    %c0_i32 = arith.constant 0 : i32
    %c0_i32_0 = arith.constant 0 : i32
    %c0_i32_1 = arith.constant 0 : i32
    return %c0_i32, %c0_i32_0 : i32, i32
  }
  func.func @transform_3(%arg0: i32) -> (i32, i32, i32) {
    %c0_i32 = arith.constant 0 : i32
    %c0_i32_0 = arith.constant 0 : i32
    %c0_i32_1 = arith.constant 0 : i32
    return %arg0, %c0_i32, %c0_i32_0 : i32, i32, i32
  }
}

</mosaic_0001>

<llo_original>
// kernel: tpu_custom_call.1
$region0: #{tpu_custom_call.1}
  #allocation0 [shape = 'u32[]', space=smem, size = 0x4, offset = 0x4, fixed_abs, tag = 'smem constant byte address 0x4 - core index']
  #allocation1 [shape = 'u32[144,128]{1,0:T(1,128)}', space=vmem, size = 0x12000, scoped, tag = 'internal scratch']
  %s0 = inlined_call_operand.vmem [shape: bf16[2,8,32], index: 0, kind: input, shape index: {}]
  %s1 = inlined_call_operand.vmem [shape: bf16[96,32], index: 1, kind: input, shape index: {}]
  %s2 = inlined_call_operand.vmem [shape: bf16[32,32], index: 2, kind: input, shape index: {}]
  %s3 = inlined_call_operand.hbm [shape: f32[2,1,256], index: 3, kind: output, shape index: {}]
  %s4 = sld [smem:[#allocation0]]
  $region45: #{tpu_custom_call.1} parent=0
    _
  %s6 = ssub.s32 1, %s4
  %s7 = scalar_select 0, %s6, %s4
  $region1: #{tpu_custom_call.1} parent=0
    #allocation2 [shape = 'u8[2048]{0}', space=vmem, size = 0x800, scoped, tag = 'output window, operand 0']
    #allocation3 [shape = 's32[2]{0}', space=sflag, size = 0x8, scoped, tag = 'scoped memory for tpu_custom_call.1']
    %8 = vsyncpa [#allocation3], 0
    %s9 = scalar_lea.sflag [#allocation3], 1
    %10 = vsyncpa %s9, 0
    loop: start=0, step=1, limit=4
    $region2: #{tpu_custom_call.1} parent=1 // loop_pre_header
      _
    $region3: #{tpu_custom_call.1} parent=1 // loop_header
      %s12 = sphi 0, %s16
      %p13 = scmp.ge.s32.totalorder %s12, 4
      %s22 = sphi 0, %s24
      %s25 = sphi 0, %s22
      %s26 = sphi 0, %s25
      %s42 = sphi 0, %s26
      %s46 = sphi 0, %s46
      %s48 = sphi 0, %s46
      %s49 = sphi 0, %s48
      %s63 = sphi 0, %s49
      %s67 = sphi 0, %s67
      %s69 = sphi 0, %s67
      %s70 = sphi 0, %s69
      %s84 = sphi 0, %s70
      %s90 = sphi 0, %s92
      %s93 = sphi 0, %s90
      %s94 = sphi 0, %s93
      %s110 = sphi 0, %s94
    $region4: #{tpu_custom_call.1} parent=1 // loop_header_branch
      %15 = sbr.rel (%p13) target = $region8
    $region5: #{tpu_custom_call.1} parent=1 // loop_body
      %s17 = ssub.s32 %s12, 1
      %s18 = ssub.s32 %s12, 2
      %s19 = sadd.s32 %s12, 1
      %s20 = ssub.s32 %s12, %s19
      %p21 = scmp.eq.s32.totalorder %s20, 0
      %s23 = sadd.s32 %s22, 1
      %s24 = scalar_select %p21, %s22, %s23
      %p27 = pneg %p21
      %p28 = scmp.eq.s32.totalorder %s12, 1
      %p29 = por %p27, %p28
      %p30 = scmp.ne.s32.totalorder %s22, %s25
      %p31 = scmp.eq.s32.totalorder %s12, 0
      %p32 = por %p30, %p31
      %p33 = scmp.ne.s32.totalorder %s22, %s25
      %p34 = scmp.eq.s32.totalorder %s17, 1
      %p35 = por %p33, %p34
      %p36 = scmp.ne.s32.totalorder %s25, %s26
      %p37 = scmp.eq.s32.totalorder %s17, 0
      %p38 = por %p36, %p37
      %p39 = scmp.ne.s32.totalorder %s25, %s26
      %p40 = scmp.eq.s32.totalorder %s18, 1
      %p41 = por %p39, %p40
      %p43 = scmp.ne.s32.totalorder %s26, %s42
      %p44 = scmp.eq.s32.totalorder %s18, 0
      %p45 = por %p43, %p44
      %s47 = sadd.s32 %s46, 1
      %p50 = scmp.eq.s32.totalorder %s12, 1
      %p51 = scmp.ne.s32.totalorder %s46, %s48
      %p52 = scmp.eq.s32.totalorder %s12, 0
      %p53 = por %p51, %p52
      %p54 = scmp.ne.s32.totalorder %s46, %s48
      %p55 = scmp.eq.s32.totalorder %s17, 1
      %p56 = por %p54, %p55
      %p57 = scmp.ne.s32.totalorder %s48, %s49
      %p58 = scmp.eq.s32.totalorder %s17, 0
      %p59 = por %p57, %p58
      %p60 = scmp.ne.s32.totalorder %s48, %s49
      %p61 = scmp.eq.s32.totalorder %s18, 1
      %p62 = por %p60, %p61
      %p64 = scmp.ne.s32.totalorder %s49, %s63
      %p65 = scmp.eq.s32.totalorder %s18, 0
      %p66 = por %p64, %p65
      %s68 = sadd.s32 %s67, 1
      %p71 = scmp.eq.s32.totalorder %s12, 1
      %p72 = scmp.ne.s32.totalorder %s67, %s69
      %p73 = scmp.eq.s32.totalorder %s12, 0
      %p74 = por %p72, %p73
      %p75 = scmp.ne.s32.totalorder %s67, %s69
      %p76 = scmp.eq.s32.totalorder %s17, 1
      %p77 = por %p75, %p76
      %p78 = scmp.ne.s32.totalorder %s69, %s70
      %p79 = scmp.eq.s32.totalorder %s17, 0
      %p80 = por %p78, %p79
      %p81 = scmp.ne.s32.totalorder %s69, %s70
      %p82 = scmp.eq.s32.totalorder %s18, 1
      %p83 = por %p81, %p82
      %p85 = scmp.ne.s32.totalorder %s70, %s84
      %p86 = scmp.eq.s32.totalorder %s18, 0
      %p87 = por %p85, %p86
      %s88 = ssub.s32 %s12, %s19
      %p89 = scmp.eq.s32.totalorder %s88, 0
      %s91 = sadd.s32 %s90, 1
      %s92 = scalar_select %p89, %s90, %s91
      %p95 = pneg %p89
      %p96 = scmp.eq.s32.totalorder %s12, 1
      %p97 = por %p95, %p96
      %p98 = scmp.ne.s32.totalorder %s90, %s93
      %p99 = scmp.eq.s32.totalorder %s12, 0
      %p100 = por %p98, %p99
      %p101 = scmp.ne.s32.totalorder %s90, %s93
      %p102 = scmp.eq.s32.totalorder %s17, 1
      %p103 = por %p101, %p102
      %p104 = scmp.ne.s32.totalorder %s93, %s94
      %p105 = scmp.eq.s32.totalorder %s17, 0
      %p106 = por %p104, %p105
      %p107 = scmp.ne.s32.totalorder %s93, %s94
      %p108 = scmp.eq.s32.totalorder %s18, 1
      %p109 = por %p107, %p108
      %p111 = scmp.ne.s32.totalorder %s94, %s110
      %p112 = scmp.eq.s32.totalorder %s18, 0
      %p113 = por %p111, %p112
      %p114 = scmp.le.s32.totalorder 1, %s12
      %p115 = scmp.lt.s32.totalorder %s12, 3
      %p116 = pnand %p114, %p115
      %p117 = pneg %p116
      // Predicated region
      $region9: #{tpu_custom_call.1} parent=5 // pred_check
        _
      $region10: #{tpu_custom_call.1} parent=5 // pred_check_branch
        %119 = sbr.rel (%p116) target = $region12
      $region11: #{tpu_custom_call.1} parent=5 // pred_region
        %s120 = ssub.s32 %s12, 1
        // Predicated region
        $region13: #{tpu_custom_call.1} parent=11 // pred_check
          %p121 = pneg %p59
        $region14: #{tpu_custom_call.1} parent=11 // pred_check_branch
          %123 = sbr.rel (%p121) target = $region16
        $region15: #{tpu_custom_call.1} parent=11 // pred_region
          _
        $region16: #{tpu_custom_call.1} parent=11 // pred_fallthru
          _
        // Predicated region
        $region17: #{tpu_custom_call.1} parent=11 // pred_check
          %p124 = pneg %p80
        $region18: #{tpu_custom_call.1} parent=11 // pred_check_branch
          %126 = sbr.rel (%p124) target = $region20
        $region19: #{tpu_custom_call.1} parent=11 // pred_region
          _
        $region20: #{tpu_custom_call.1} parent=11 // pred_fallthru
          _
      $region12: #{tpu_custom_call.1} parent=5 // pred_fallthru
        _
      %p127 = scmp.lt.s32.totalorder %s12, 2
      // Predicated region
      $region21: #{tpu_custom_call.1} parent=5 // pred_check
        %p128 = pneg %p127
      $region22: #{tpu_custom_call.1} parent=5 // pred_check_branch
        %130 = sbr.rel (%p128) target = $region24
      $region23: #{tpu_custom_call.1} parent=5 // pred_region
        // Predicated region
        $region25: #{tpu_custom_call.1} parent=23 // pred_check
          %p131 = pneg %p32
        $region26: #{tpu_custom_call.1} parent=23 // pred_check_branch
          %133 = sbr.rel (%p131) target = $region28
        $region27: #{tpu_custom_call.1} parent=23 // pred_region
          %p134 = scmp.lt.s32.totalorder %s12, 1
          %s135 = scalar_select %p134, %s12, 1
          %s136 = smul.addr %s135, 4
          %s137 = scalar_lea.vmem %s0, %s136
        $region28: #{tpu_custom_call.1} parent=23 // pred_fallthru
          _
      $region24: #{tpu_custom_call.1} parent=5 // pred_fallthru
        _
      %p138 = scmp.le.s32.totalorder 1, %s12
      %p139 = scmp.lt.s32.totalorder %s12, 3
      %p140 = pnand %p138, %p139
      %p141 = pneg %p140
      // Predicated region
      $region29: #{tpu_custom_call.1} parent=5 // pred_check
        _
      $region30: #{tpu_custom_call.1} parent=5 // pred_check_branch
        %143 = sbr.rel (%p140) target = $region32
      $region31: #{tpu_custom_call.1} parent=5 // pred_region
        %s144 = ssub.s32 %s12, 1
        %p145 = scmp.lt.s32.totalorder %s17, 1
        %s146 = scalar_select %p145, %s17, 1
        %s147 = smul.addr %s146, 4
        %s148 = scalar_lea.vmem %s0, %s147
        %p149 = pneg %p38
        %p150 = pneg %p35
        %p151 = pneg %p59
        %p152 = pneg %p56
        %p153 = pneg %p80
        %p154 = pneg %p77
        %p155 = pneg %p106
        %p156 = pneg %p103
        %s157 = sand.u32 %s93, 1
        %s158 = scalar_lea.sflag [#allocation3], %s157
        %s159 = sand.u32 %s93, 1
        %s160 = smul.addr %s159, 2
        %s161 = scalar_lea.vmem [#allocation2], %s160
        %p162 = scmp.lt.s32.totalorder %s17, 1
        %s163 = scalar_select %p162, %s17, 1
        %s164 = smul.addr %s163, 4
        %s165 = scalar_lea.vmem %s0, %s164
        %v167 = vld [vmem:[%s165] sm:$0xf]
        %v168 = vld [vmem:[%s1] sm:$0xf]
        %v169 = vld [vmem:[%s1 + $0x4] sm:$0xf]
        %v170 = vld [vmem:[%s1 + $0x8] sm:$0xf]
        %v171 = vld [vmem:[%s1 + $0xc] sm:$0xf]
        %v172 = vld [vmem:[%s1 + $0x10] sm:$0xf]
        %v173 = vld [vmem:[%s1 + $0x14] sm:$0xf]
        %v174 = vld [vmem:[%s1 + $0x18] sm:$0xf]
        %v175 = vld [vmem:[%s1 + $0x1c] sm:$0xf]
        %v176 = vld [vmem:[%s1 + $0x20] sm:$0xf]
        %v177 = vld [vmem:[%s1 + $0x24] sm:$0xf]
        %v178 = vld [vmem:[%s1 + $0x28] sm:$0xf]
        %v179 = vld [vmem:[%s1 + $0x2c] sm:$0xf]
        %v180 = vld [vmem:[%s2] sm:$0xf]
        %v181 = vld [vmem:[%s2 + $0x4] sm:$0xf]
        %v182 = vld [vmem:[%s2 + $0x8] sm:$0xf]
        %v183 = vld [vmem:[%s2 + $0xc] sm:$0xf]
        %v196 = vunpack.c.l.b16 %v168
        %v197 = vunpack.c.l.b16 %v169
        %v198 = vunpack.c.l.b16 %v170
        %v199 = vunpack.c.l.b16 %v171
        %v200 = vunpack.c.l.b16 %v172
        %v201 = vunpack.c.l.b16 %v173
        %v202 = vunpack.c.l.b16 %v174
        %v203 = vunpack.c.l.b16 %v175
        %v204 = vunpack.c.l.b16 %v176
        %v205 = vunpack.c.l.b16 %v177
        %v206 = vunpack.c.l.b16 %v178
        %v207 = vunpack.c.l.b16 %v179
        %v208 = vpack.c.b16 %v197, %v196
        %v209 = vpack.c.b16 %v199, %v198
        %v210 = vpack.c.b16 %v201, %v200
        %v211 = vpack.c.b16 %v203, %v202
        %v212 = vpack.c.b16 %v205, %v204
        %v213 = vpack.c.b16 %v207, %v206
        %vm214 = vcmask 261120
        %v216 = vsel %vm214, %v167, 0
        %v219 = vsel %vm214, %v208, 0
        %v222 = vsel %vm214, %v209, 0
        %v225 = vsel %vm214, %v210, 0
        %v228 = vsel %vm214, %v211, 0
        %v231 = vsel %vm214, %v212, 0
        %v234 = vsel %vm214, %v213, 0
        %236 = vmatprep.subr.bf16.mxu0 0
        %237 = vmatpush1.bf16.xpose.msra.mxu0 %v219
        %238 = vmatprep.subr.bf16.mxu0 0
        %239 = vmatpush1.bf16.xpose.msra.mxu0 %v222
        %240 = vmatprep.subr.bf16.mxu0 0
        %241 = vmatpush1.bf16.xpose.msra.mxu0 %v225
        %242 = vmatprep.subr.bf16.mxu0 0
        %243 = vmatpush1.bf16.xpose.msra.mxu0 %v228
        %244 = vmatprep.subr.bf16.mxu0 0
        %245 = vmatpush1.bf16.xpose.msra.mxu0 %v231
        %246 = vmatprep.subr.bf16.mxu0 0
        %247 = vmatpush1.bf16.xpose.msra.mxu0 %v234
        %248 = vmatprep.subr.bf16.mxu0 0
        %249 = vmatpush1.bf16.xpose.msra.mxu0 0
        %250 = vmatprep.subr.bf16.mxu0 0
        %251 = vmatpush1.bf16.xpose.msra.mxu0 0
        %252 = vmatprep.subr.bf16.mxu0 0
        %253 = vmatpush1.bf16.xpose.msra.mxu0 0
        %254 = vmatprep.subr.bf16.mxu0 0
        %255 = vmatpush1.bf16.xpose.msra.mxu0 0
        %256 = vmatprep.subr.bf16.mxu0 0
        %257 = vmatpush1.bf16.xpose.msra.mxu0 0
        %258 = vmatprep.subr.bf16.mxu0 0
        %259 = vmatpush1.bf16.xpose.msra.mxu0 0
        %260 = vmatprep.subr.bf16.mxu0 0
        %261 = vmatpush1.bf16.xpose.msra.mxu0 0
        %262 = vmatprep.subr.bf16.mxu0 0
        %263 = vmatpush1.bf16.xpose.msra.mxu0 0
        %264 = vmatprep.subr.bf16.mxu0 0
        %265 = vmatpush1.bf16.xpose.msra.mxu0 0
        %266 = vmatprep.subr.bf16.mxu0 0
        %267 = vmatpush1.bf16.xpose.msra.mxu0 0
        %268 = vmatprep.mubr.bf16.mxu0 0
        %269 = vmatmul.mubr.bf16.gmra.mrb[0].mxu0 %v216
        %v270 = vpop.f32.mrb[0].mxu0
        %v271 = vadd.f32 0.0, %v270
        %v272 = vpop.f32.mrb[0].mxu0
        %v273 = vpop.f32.mrb[0].mxu0
        %v274 = vpop.f32.mrb[0].mxu0
        %275 = vdwg.mxu0
        %v276 = vmul.f32 %v271, 0.35355338
        %v277 = vpack.c.bf16 %v276, %v276
        %v278 = vpack.c.bf16 %v271, %v271
        %280 = vrot.lane.b32.xlu0 %v277, 120
        %v281 = vpop.permute.xlu0 %280
        %282 = vrot.lane.b32.xlu0 %v277, 112
        %v283 = vpop.permute.xlu0 %282
        %284 = vrot.lane.b32.xlu0 %v277, 104
        %v285 = vpop.permute.xlu0 %284
        %287 = vrot.lane.b32.xlu0 %v278, 120
        %v288 = vpop.permute.xlu0 %287
        %289 = vrot.lane.b32.xlu0 %v278, 112
        %v290 = vpop.permute.xlu0 %289
        %291 = vrot.lane.b32.xlu0 %v278, 104
        %v292 = vpop.permute.xlu0 %291
        %293 = vrot.lane.b32.xlu0 %v278, 96
        %v294 = vpop.permute.xlu0 %293
        %vm295 = vcmask 64512
        %v297 = vsel %vm295, %v277, 0
        %v300 = vsel %vm295, %v294, 0
        %302 = vmatprep.subr.bf16.mxu0 0
        %303 = vmatpush1.bf16.xpose.msra.mxu0 %v300
        %304 = vmatprep.subr.bf16.mxu0 0
        %305 = vmatpush1.bf16.xpose.msra.mxu0 0
        %306 = vmatprep.subr.bf16.mxu0 0
        %307 = vmatpush1.bf16.xpose.msra.mxu0 0
        %308 = vmatprep.subr.bf16.mxu0 0
        %309 = vmatpush1.bf16.xpose.msra.mxu0 0
        %310 = vmatprep.subr.bf16.mxu0 0
        %311 = vmatpush1.bf16.xpose.msra.mxu0 0
        %312 = vmatprep.subr.bf16.mxu0 0
        %313 = vmatpush1.bf16.xpose.msra.mxu0 0
        %314 = vmatprep.subr.bf16.mxu0 0
        %315 = vmatpush1.bf16.xpose.msra.mxu0 0
        %316 = vmatprep.subr.bf16.mxu0 0
        %317 = vmatpush1.bf16.xpose.msra.mxu0 0
        %318 = vmatprep.subr.bf16.mxu0 0
        %319 = vmatpush1.bf16.xpose.msra.mxu0 0
        %320 = vmatprep.subr.bf16.mxu0 0
        %321 = vmatpush1.bf16.xpose.msra.mxu0 0
        %322 = vmatprep.subr.bf16.mxu0 0
        %323 = vmatpush1.bf16.xpose.msra.mxu0 0
        %324 = vmatprep.subr.bf16.mxu0 0
        %325 = vmatpush1.bf16.xpose.msra.mxu0 0
        %326 = vmatprep.subr.bf16.mxu0 0
        %327 = vmatpush1.bf16.xpose.msra.mxu0 0
        %328 = vmatprep.subr.bf16.mxu0 0
        %329 = vmatpush1.bf16.xpose.msra.mxu0 0
        %330 = vmatprep.subr.bf16.mxu0 0
        %331 = vmatpush1.bf16.xpose.msra.mxu0 0
        %332 = vmatprep.subr.bf16.mxu0 0
        %333 = vmatpush1.bf16.xpose.msra.mxu0 0
        %334 = vmatprep.mubr.bf16.mxu0 0
        %335 = vmatmul.mubr.bf16.gmra.mrb[0].mxu0 %v297
        %v336 = vpop.f32.mrb[0].mxu0
        %v337 = vadd.f32 0.0, %v336
        %v338 = vpop.f32.mrb[0].mxu0
        %v339 = vpop.f32.mrb[0].mxu0
        %v340 = vpop.f32.mrb[0].mxu0
        %341 = vdwg.mxu0
        %342 = vrot.lane.b32.xlu0 %v288, 96
        %v343 = vpop.permute.xlu0 %342
        %v345 = vsel %vm295, %v281, 0
        %v348 = vsel %vm295, %v343, 0
        %350 = vmatprep.subr.bf16.mxu0 0
        %351 = vmatpush1.bf16.xpose.msra.mxu0 %v348
        %352 = vmatprep.subr.bf16.mxu0 0
        %353 = vmatpush1.bf16.xpose.msra.mxu0 0
        %354 = vmatprep.subr.bf16.mxu0 0
        %355 = vmatpush1.bf16.xpose.msra.mxu0 0
        %356 = vmatprep.subr.bf16.mxu0 0
        %357 = vmatpush1.bf16.xpose.msra.mxu0 0
        %358 = vmatprep.subr.bf16.mxu0 0
        %359 = vmatpush1.bf16.xpose.msra.mxu0 0
        %360 = vmatprep.subr.bf16.mxu0 0
        %361 = vmatpush1.bf16.xpose.msra.mxu0 0
        %362 = vmatprep.subr.bf16.mxu0 0
        %363 = vmatpush1.bf16.xpose.msra.mxu0 0
        %364 = vmatprep.subr.bf16.mxu0 0
        %365 = vmatpush1.bf16.xpose.msra.mxu0 0
        %366 = vmatprep.subr.bf16.mxu0 0
        %367 = vmatpush1.bf16.xpose.msra.mxu0 0
        %368 = vmatprep.subr.bf16.mxu0 0
        %369 = vmatpush1.bf16.xpose.msra.mxu0 0
        %370 = vmatprep.subr.bf16.mxu0 0
        %371 = vmatpush1.bf16.xpose.msra.mxu0 0
        %372 = vmatprep.subr.bf16.mxu0 0
        %373 = vmatpush1.bf16.xpose.msra.mxu0 0
        %374 = vmatprep.subr.bf16.mxu0 0
        %375 = vmatpush1.bf16.xpose.msra.mxu0 0
        %376 = vmatprep.subr.bf16.mxu0 0
        %377 = vmatpush1.bf16.xpose.msra.mxu0 0
        %378 = vmatprep.subr.bf16.mxu0 0
        %379 = vmatpush1.bf16.xpose.msra.mxu0 0
        %380 = vmatprep.subr.bf16.mxu0 0
        %381 = vmatpush1.bf16.xpose.msra.mxu0 0
        %382 = vmatprep.mubr.bf16.mxu0 0
        %383 = vmatmul.mubr.bf16.gmra.mrb[0].mxu0 %v345
        %v384 = vpop.f32.mrb[0].mxu0
        %v385 = vadd.f32 0.0, %v384
        %v386 = vpop.f32.mrb[0].mxu0
        %v387 = vpop.f32.mrb[0].mxu0
        %v388 = vpop.f32.mrb[0].mxu0
        %389 = vdwg.mxu0
        %390 = vrot.lane.b32.xlu0 %v290, 96
        %v391 = vpop.permute.xlu0 %390
        %v393 = vsel %vm295, %v283, 0
        %v396 = vsel %vm295, %v391, 0
        %398 = vmatprep.subr.bf16.mxu0 0
        %399 = vmatpush1.bf16.xpose.msra.mxu0 %v396
        %400 = vmatprep.subr.bf16.mxu0 0
        %401 = vmatpush1.bf16.xpose.msra.mxu0 0
        %402 = vmatprep.subr.bf16.mxu0 0
        %403 = vmatpush1.bf16.xpose.msra.mxu0 0
        %404 = vmatprep.subr.bf16.mxu0 0
        %405 = vmatpush1.bf16.xpose.msra.mxu0 0
        %406 = vmatprep.subr.bf16.mxu0 0
        %407 = vmatpush1.bf16.xpose.msra.mxu0 0
        %408 = vmatprep.subr.bf16.mxu0 0
        %409 = vmatpush1.bf16.xpose.msra.mxu0 0
        %410 = vmatprep.subr.bf16.mxu0 0
        %411 = vmatpush1.bf16.xpose.msra.mxu0 0
        %412 = vmatprep.subr.bf16.mxu0 0
        %413 = vmatpush1.bf16.xpose.msra.mxu0 0
        %414 = vmatprep.subr.bf16.mxu0 0
        %415 = vmatpush1.bf16.xpose.msra.mxu0 0
        %416 = vmatprep.subr.bf16.mxu0 0
        %417 = vmatpush1.bf16.xpose.msra.mxu0 0
        %418 = vmatprep.subr.bf16.mxu0 0
        %419 = vmatpush1.bf16.xpose.msra.mxu0 0
        %420 = vmatprep.subr.bf16.mxu0 0
        %421 = vmatpush1.bf16.xpose.msra.mxu0 0
        %422 = vmatprep.subr.bf16.mxu0 0
        %423 = vmatpush1.bf16.xpose.msra.mxu0 0
        %424 = vmatprep.subr.bf16.mxu0 0
        %425 = vmatpush1.bf16.xpose.msra.mxu0 0
        %426 = vmatprep.subr.bf16.mxu0 0
        %427 = vmatpush1.bf16.xpose.msra.mxu0 0
        %428 = vmatprep.subr.bf16.mxu0 0
        %429 = vmatpush1.bf16.xpose.msra.mxu0 0
        %430 = vmatprep.mubr.bf16.mxu0 0
        %431 = vmatmul.mubr.bf16.gmra.mrb[0].mxu0 %v393
        %v432 = vpop.f32.mrb[0].mxu0
        %v433 = vadd.f32 0.0, %v432
        %v434 = vpop.f32.mrb[0].mxu0
        %v435 = vpop.f32.mrb[0].mxu0
        %v436 = vpop.f32.mrb[0].mxu0
        %437 = vdwg.mxu0
        %438 = vrot.lane.b32.xlu0 %v292, 96
        %v439 = vpop.permute.xlu0 %438
        %v441 = vsel %vm295, %v285, 0
        %v444 = vsel %vm295, %v439, 0
        %446 = vmatprep.subr.bf16.mxu0 0
        %447 = vmatpush1.bf16.xpose.msra.mxu0 %v444
        %448 = vmatprep.subr.bf16.mxu0 0
        %449 = vmatpush1.bf16.xpose.msra.mxu0 0
        %450 = vmatprep.subr.bf16.mxu0 0
        %451 = vmatpush1.bf16.xpose.msra.mxu0 0
        %452 = vmatprep.subr.bf16.mxu0 0
        %453 = vmatpush1.bf16.xpose.msra.mxu0 0
        %454 = vmatprep.subr.bf16.mxu0 0
        %455 = vmatpush1.bf16.xpose.msra.mxu0 0
        %456 = vmatprep.subr.bf16.mxu0 0
        %457 = vmatpush1.bf16.xpose.msra.mxu0 0
        %458 = vmatprep.subr.bf16.mxu0 0
        %459 = vmatpush1.bf16.xpose.msra.mxu0 0
        %460 = vmatprep.subr.bf16.mxu0 0
        %461 = vmatpush1.bf16.xpose.msra.mxu0 0
        %462 = vmatprep.subr.bf16.mxu0 0
        %463 = vmatpush1.bf16.xpose.msra.mxu0 0
        %464 = vmatprep.subr.bf16.mxu0 0
        %465 = vmatpush1.bf16.xpose.msra.mxu0 0
        %466 = vmatprep.subr.bf16.mxu0 0
        %467 = vmatpush1.bf16.xpose.msra.mxu0 0
        %468 = vmatprep.subr.bf16.mxu0 0
        %469 = vmatpush1.bf16.xpose.msra.mxu0 0
        %470 = vmatprep.subr.bf16.mxu0 0
        %471 = vmatpush1.bf16.xpose.msra.mxu0 0
        %472 = vmatprep.subr.bf16.mxu0 0
        %473 = vmatpush1.bf16.xpose.msra.mxu0 0
        %474 = vmatprep.subr.bf16.mxu0 0
        %475 = vmatpush1.bf16.xpose.msra.mxu0 0
        %476 = vmatprep.subr.bf16.mxu0 0
        %477 = vmatpush1.bf16.xpose.msra.mxu0 0
        %478 = vmatprep.mubr.bf16.mxu0 0
        %479 = vmatmul.mubr.bf16.gmra.mrb[0].mxu0 %v441
        %v480 = vpop.f32.mrb[0].mxu0
        %v481 = vadd.f32 0.0, %v480
        %v482 = vpop.f32.mrb[0].mxu0
        %v483 = vpop.f32.mrb[0].mxu0
        %v484 = vpop.f32.mrb[0].mxu0
        %485 = vdwg.mxu0
        %v486 = vlaneseq
        %v487 = vshrl.u32 %v486, 7
        %v488 = vlaneseq
        %v489 = vand.u32 %v488, 127
        %vm490 = vcmp.le.s32.totalorder %v489, %v487
        %v491 = vsel %vm490, 1, 0
        %vm492 = vcmp.eq.s32.totalorder %v491, 1
        %v493 = vsel %vm492, %v337, -1e+30
        %v494 = vsel %vm492, %v385, -1e+30
        %v495 = vsel %vm492, %v433, -1e+30
        %v496 = vsel %vm492, %v481, -1e+30
        %v497 = vsel %vm295, %v493, -inf
        %498 = vmax.xlane.f32.xlu0 %v497
        %v499 = vpop.xlane.xlu0 %498
        %v500 = vsel %vm295, %v494, -inf
        %501 = vmax.xlane.f32.xlu0 %v500
        %v502 = vpop.xlane.xlu0 %501
        %v503 = vsel %vm295, %v495, -inf
        %504 = vmax.xlane.f32.xlu0 %v503
        %v505 = vpop.xlane.xlu0 %504
        %v506 = vsel %vm295, %v496, -inf
        %507 = vmax.xlane.f32.xlu0 %v506
        %v508 = vpop.xlane.xlu0 %507
        %v509 = vsub.f32 %v493, %v499
        %v510 = vsub.f32 %v494, %v502
        %v511 = vsub.f32 %v495, %v505
        %v512 = vsub.f32 %v496, %v508
        %v513 = vmul.f32 %v509, 1.442695
        %v514 = vpow.pop %v513
        %v515 = vmul.f32 %v510, 1.442695
        %v516 = vpow.pop %v515
        %v517 = vmul.f32 %v511, 1.442695
        %v518 = vpow.pop %v517
        %v519 = vmul.f32 %v512, 1.442695
        %v520 = vpow.pop %v519
        %v521 = vsel %vm295, %v514, 0.0
        %522 = vadd.xlane.f32.xlu0 %v521
        %v523 = vpop.xlane.xlu0 %522
        %v524 = vsel %vm295, %v516, 0.0
        %525 = vadd.xlane.f32.xlu0 %v524
        %v526 = vpop.xlane.xlu0 %525
        %v527 = vsel %vm295, %v518, 0.0
        %528 = vadd.xlane.f32.xlu0 %v527
        %v529 = vpop.xlane.xlu0 %528
        %v530 = vsel %vm295, %v520, 0.0
        %531 = vadd.xlane.f32.xlu0 %v530
        %v532 = vpop.xlane.xlu0 %531
        %v533 = vpack.c.bf16 %v514, %v514
        %v534 = vpack.c.bf16 %v516, %v516
        %v535 = vpack.c.bf16 %v518, %v518
        %v536 = vpack.c.bf16 %v520, %v520
        %537 = vrot.lane.b32.xlu0 %v278, 64
        %v538 = vpop.permute.xlu0 %537
        %v540 = vsel %vm295, %v533, 0
        %vm542 = vcmask 1043456
        %v544 = vsel %vm542, %v538, 0
        %546 = vmatprep.subr.bf16.mxu0 0
        %547 = vmatpush1.bf16.msra.mxu0 %v544
        %548 = vmatprep.subr.bf16.mxu0 0
        %549 = vmatpush1.bf16.msra.mxu0 0
        %550 = vmatprep.subr.bf16.mxu0 0
        %551 = vmatpush1.bf16.msra.mxu0 0
        %552 = vmatprep.subr.bf16.mxu0 0
        %553 = vmatpush1.bf16.msra.mxu0 0
        %554 = vmatprep.subr.bf16.mxu0 0
        %555 = vmatpush1.bf16.msra.mxu0 0
        %556 = vmatprep.subr.bf16.mxu0 0
        %557 = vmatpush1.bf16.msra.mxu0 0
        %558 = vmatprep.subr.bf16.mxu0 0
        %559 = vmatpush1.bf16.msra.mxu0 0
        %560 = vmatprep.subr.bf16.mxu0 0
        %561 = vmatpush1.bf16.msra.mxu0 0
        %562 = vmatprep.subr.bf16.mxu0 0
        %563 = vmatpush1.bf16.msra.mxu0 0
        %564 = vmatprep.subr.bf16.mxu0 0
        %565 = vmatpush1.bf16.msra.mxu0 0
        %566 = vmatprep.subr.bf16.mxu0 0
        %567 = vmatpush1.bf16.msra.mxu0 0
        %568 = vmatprep.subr.bf16.mxu0 0
        %569 = vmatpush1.bf16.msra.mxu0 0
        %570 = vmatprep.subr.bf16.mxu0 0
        %571 = vmatpush1.bf16.msra.mxu0 0
        %572 = vmatprep.subr.bf16.mxu0 0
        %573 = vmatpush1.bf16.msra.mxu0 0
        %574 = vmatprep.subr.bf16.mxu0 0
        %575 = vmatpush1.bf16.msra.mxu0 0
        %576 = vmatprep.subr.bf16.mxu0 0
        %577 = vmatpush1.bf16.msra.mxu0 0
        %578 = vmatprep.mubr.bf16.mxu0 0
        %579 = vmatmul.mubr.bf16.gmra.mrb[0].mxu0 %v540
        %v580 = vpop.f32.mrb[0].mxu0
        %v581 = vadd.f32 0.0, %v580
        %v582 = vpop.f32.mrb[0].mxu0
        %v583 = vpop.f32.mrb[0].mxu0
        %v584 = vpop.f32.mrb[0].mxu0
        %585 = vdwg.mxu0
        %586 = vrot.lane.b32.xlu0 %v288, 64
        %v587 = vpop.permute.xlu0 %586
        %v589 = vsel %vm295, %v534, 0
        %v592 = vsel %vm542, %v587, 0
        %594 = vmatprep.subr.bf16.mxu0 0
        %595 = vmatpush1.bf16.msra.mxu0 %v592
        %596 = vmatprep.subr.bf16.mxu0 0
        %597 = vmatpush1.bf16.msra.mxu0 0
        %598 = vmatprep.subr.bf16.mxu0 0
        %599 = vmatpush1.bf16.msra.mxu0 0
        %600 = vmatprep.subr.bf16.mxu0 0
        %601 = vmatpush1.bf16.msra.mxu0 0
        %602 = vmatprep.subr.bf16.mxu0 0
        %603 = vmatpush1.bf16.msra.mxu0 0
        %604 = vmatprep.subr.bf16.mxu0 0
        %605 = vmatpush1.bf16.msra.mxu0 0
        %606 = vmatprep.subr.bf16.mxu0 0
        %607 = vmatpush1.bf16.msra.mxu0 0
        %608 = vmatprep.subr.bf16.mxu0 0
        %609 = vmatpush1.bf16.msra.mxu0 0
        %610 = vmatprep.subr.bf16.mxu0 0
        %611 = vmatpush1.bf16.msra.mxu0 0
        %612 = vmatprep.subr.bf16.mxu0 0
        %613 = vmatpush1.bf16.msra.mxu0 0
        %614 = vmatprep.subr.bf16.mxu0 0
        %615 = vmatpush1.bf16.msra.mxu0 0
        %616 = vmatprep.subr.bf16.mxu0 0
        %617 = vmatpush1.bf16.msra.mxu0 0
        %618 = vmatprep.subr.bf16.mxu0 0
        %619 = vmatpush1.bf16.msra.mxu0 0
        %620 = vmatprep.subr.bf16.mxu0 0
        %621 = vmatpush1.bf16.msra.mxu0 0
        %622 = vmatprep.subr.bf16.mxu0 0
        %623 = vmatpush1.bf16.msra.mxu0 0
        %624 = vmatprep.subr.bf16.mxu0 0
        %625 = vmatpush1.bf16.msra.mxu0 0
        %626 = vmatprep.mubr.bf16.mxu0 0
        %627 = vmatmul.mubr.bf16.gmra.mrb[0].mxu0 %v589
        %v628 = vpop.f32.mrb[0].mxu0
        %v629 = vadd.f32 0.0, %v628
        %v630 = vpop.f32.mrb[0].mxu0
        %v631 = vpop.f32.mrb[0].mxu0
        %v632 = vpop.f32.mrb[0].mxu0
        %633 = vdwg.mxu0
        %634 = vrot.lane.b32.xlu0 %v290, 64
        %v635 = vpop.permute.xlu0 %634
        %v637 = vsel %vm295, %v535, 0
        %v640 = vsel %vm542, %v635, 0
        %642 = vmatprep.subr.bf16.mxu0 0
        %643 = vmatpush1.bf16.msra.mxu0 %v640
        %644 = vmatprep.subr.bf16.mxu0 0
        %645 = vmatpush1.bf16.msra.mxu0 0
        %646 = vmatprep.subr.bf16.mxu0 0
        %647 = vmatpush1.bf16.msra.mxu0 0
        %648 = vmatprep.subr.bf16.mxu0 0
        %649 = vmatpush1.bf16.msra.mxu0 0
        %650 = vmatprep.subr.bf16.mxu0 0
        %651 = vmatpush1.bf16.msra.mxu0 0
        %652 = vmatprep.subr.bf16.mxu0 0
        %653 = vmatpush1.bf16.msra.mxu0 0
        %654 = vmatprep.subr.bf16.mxu0 0
        %655 = vmatpush1.bf16.msra.mxu0 0
        %656 = vmatprep.subr.bf16.mxu0 0
        %657 = vmatpush1.bf16.msra.mxu0 0
        %658 = vmatprep.subr.bf16.mxu0 0
        %659 = vmatpush1.bf16.msra.mxu0 0
        %660 = vmatprep.subr.bf16.mxu0 0
        %661 = vmatpush1.bf16.msra.mxu0 0
        %662 = vmatprep.subr.bf16.mxu0 0
        %663 = vmatpush1.bf16.msra.mxu0 0
        %664 = vmatprep.subr.bf16.mxu0 0
        %665 = vmatpush1.bf16.msra.mxu0 0
        %666 = vmatprep.subr.bf16.mxu0 0
        %667 = vmatpush1.bf16.msra.mxu0 0
        %668 = vmatprep.subr.bf16.mxu0 0
        %669 = vmatpush1.bf16.msra.mxu0 0
        %670 = vmatprep.subr.bf16.mxu0 0
        %671 = vmatpush1.bf16.msra.mxu0 0
        %672 = vmatprep.subr.bf16.mxu0 0
        %673 = vmatpush1.bf16.msra.mxu0 0
        %674 = vmatprep.mubr.bf16.mxu0 0
        %675 = vmatmul.mubr.bf16.gmra.mrb[0].mxu0 %v637
        %v676 = vpop.f32.mrb[0].mxu0
        %v677 = vadd.f32 0.0, %v676
        %v678 = vpop.f32.mrb[0].mxu0
        %v679 = vpop.f32.mrb[0].mxu0
        %v680 = vpop.f32.mrb[0].mxu0
        %681 = vdwg.mxu0
        %682 = vrot.lane.b32.xlu0 %v292, 64
        %v683 = vpop.permute.xlu0 %682
        %v685 = vsel %vm295, %v536, 0
        %v688 = vsel %vm542, %v683, 0
        %690 = vmatprep.subr.bf16.mxu0 0
        %691 = vmatpush1.bf16.msra.mxu0 %v688
        %692 = vmatprep.subr.bf16.mxu0 0
        %693 = vmatpush1.bf16.msra.mxu0 0
        %694 = vmatprep.subr.bf16.mxu0 0
        %695 = vmatpush1.bf16.msra.mxu0 0
        %696 = vmatprep.subr.bf16.mxu0 0
        %697 = vmatpush1.bf16.msra.mxu0 0
        %698 = vmatprep.subr.bf16.mxu0 0
        %699 = vmatpush1.bf16.msra.mxu0 0
        %700 = vmatprep.subr.bf16.mxu0 0
        %701 = vmatpush1.bf16.msra.mxu0 0
        %702 = vmatprep.subr.bf16.mxu0 0
        %703 = vmatpush1.bf16.msra.mxu0 0
        %704 = vmatprep.subr.bf16.mxu0 0
        %705 = vmatpush1.bf16.msra.mxu0 0
        %706 = vmatprep.subr.bf16.mxu0 0
        %707 = vmatpush1.bf16.msra.mxu0 0
        %708 = vmatprep.subr.bf16.mxu0 0
        %709 = vmatpush1.bf16.msra.mxu0 0
        %710 = vmatprep.subr.bf16.mxu0 0
        %711 = vmatpush1.bf16.msra.mxu0 0
        %712 = vmatprep.subr.bf16.mxu0 0
        %713 = vmatpush1.bf16.msra.mxu0 0
        %714 = vmatprep.subr.bf16.mxu0 0
        %715 = vmatpush1.bf16.msra.mxu0 0
        %716 = vmatprep.subr.bf16.mxu0 0
        %717 = vmatpush1.bf16.msra.mxu0 0
        %718 = vmatprep.subr.bf16.mxu0 0
        %719 = vmatpush1.bf16.msra.mxu0 0
        %720 = vmatprep.subr.bf16.mxu0 0
        %721 = vmatpush1.bf16.msra.mxu0 0
        %722 = vmatprep.mubr.bf16.mxu0 0
        %723 = vmatmul.mubr.bf16.gmra.mrb[0].mxu0 %v685
        %v724 = vpop.f32.mrb[0].mxu0
        %v725 = vadd.f32 0.0, %v724
        %v726 = vpop.f32.mrb[0].mxu0
        %v727 = vpop.f32.mrb[0].mxu0
        %v728 = vpop.f32.mrb[0].mxu0
        %729 = vdwg.mxu0
        %v730 = vrcp.pop %v523
        %v731 = vrcp.pop %v526
        %v732 = vrcp.pop %v529
        %v733 = vrcp.pop %v532
        %v734 = vmul.f32 %v581, %v730
        %v735 = vmul.f32 %v629, %v731
        %v736 = vmul.f32 %v677, %v732
        %v737 = vmul.f32 %v725, %v733
        %739 = vrot.lane.b32.xlu0 %v735, 8
        %v740 = vpop.permute.xlu0 %739
        %743 = vrot.lane.b32.xlu0 %v736, 16
        %v744 = vpop.permute.xlu0 %743
        %747 = vrot.lane.b32.xlu0 %v737, 24
        %v748 = vpop.permute.xlu0 %747
        %v750 = vsel %vm295, %v734, %v740
        %vm751 = vcmask 130048
        %v752 = vsel %vm751, %v750, %v744
        %vm753 = vcmask 195584
        %v754 = vsel %vm753, %v752, %v748
        %v755 = vpack.c.bf16 %v754, %v754
        %v760 = vunpack.c.l.b16 %v180
        %v761 = vunpack.c.l.b16 %v181
        %v762 = vunpack.c.l.b16 %v182
        %v763 = vunpack.c.l.b16 %v183
        %v764 = vpack.c.b16 %v761, %v760
        %v765 = vpack.c.b16 %v763, %v762
        %v767 = vsel %vm214, %v755, 0
        %v770 = vsel %vm214, %v764, 0
        %v773 = vsel %vm214, %v765, 0
        %775 = vmatprep.subr.bf16.mxu0 0
        %776 = vmatpush1.bf16.xpose.msra.mxu0 %v770
        %777 = vmatprep.subr.bf16.mxu0 0
        %778 = vmatpush1.bf16.xpose.msra.mxu0 %v773
        %779 = vmatprep.subr.bf16.mxu0 0
        %780 = vmatpush1.bf16.xpose.msra.mxu0 0
        %781 = vmatprep.subr.bf16.mxu0 0
        %782 = vmatpush1.bf16.xpose.msra.mxu0 0
        %783 = vmatprep.subr.bf16.mxu0 0
        %784 = vmatpush1.bf16.xpose.msra.mxu0 0
        %785 = vmatprep.subr.bf16.mxu0 0
        %786 = vmatpush1.bf16.xpose.msra.mxu0 0
        %787 = vmatprep.subr.bf16.mxu0 0
        %788 = vmatpush1.bf16.xpose.msra.mxu0 0
        %789 = vmatprep.subr.bf16.mxu0 0
        %790 = vmatpush1.bf16.xpose.msra.mxu0 0
        %791 = vmatprep.subr.bf16.mxu0 0
        %792 = vmatpush1.bf16.xpose.msra.mxu0 0
        %793 = vmatprep.subr.bf16.mxu0 0
        %794 = vmatpush1.bf16.xpose.msra.mxu0 0
        %795 = vmatprep.subr.bf16.mxu0 0
        %796 = vmatpush1.bf16.xpose.msra.mxu0 0
        %797 = vmatprep.subr.bf16.mxu0 0
        %798 = vmatpush1.bf16.xpose.msra.mxu0 0
        %799 = vmatprep.subr.bf16.mxu0 0
        %800 = vmatpush1.bf16.xpose.msra.mxu0 0
        %801 = vmatprep.subr.bf16.mxu0 0
        %802 = vmatpush1.bf16.xpose.msra.mxu0 0
        %803 = vmatprep.subr.bf16.mxu0 0
        %804 = vmatpush1.bf16.xpose.msra.mxu0 0
        %805 = vmatprep.subr.bf16.mxu0 0
        %806 = vmatpush1.bf16.xpose.msra.mxu0 0
        %807 = vmatprep.mubr.bf16.mxu0 0
        %808 = vmatmul.mubr.bf16.gmra.mrb[0].mxu0 %v767
        %v809 = vpop.f32.mrb[0].mxu0
        %v810 = vadd.f32 0.0, %v809
        %v811 = vpop.f32.mrb[0].mxu0
        %v812 = vpop.f32.mrb[0].mxu0
        %v813 = vpop.f32.mrb[0].mxu0
        %814 = vdwg.mxu0
        %v816 = vrot.slane %v810, 1
        %817 = vrot.lane.b32.xlu0 %v816, 32
        %v818 = vpop.permute.xlu0 %817
        %v820 = vrot.slane %v810, 2
        %821 = vrot.lane.b32.xlu0 %v820, 64
        %v822 = vpop.permute.xlu0 %821
        %v824 = vrot.slane %v810, 3
        %825 = vrot.lane.b32.xlu0 %v824, 96
        %v826 = vpop.permute.xlu0 %825
        %v828 = vrot.slane %v810, 4
        %v830 = vrot.slane %v810, 5
        %831 = vrot.lane.b32.xlu0 %v830, 32
        %v832 = vpop.permute.xlu0 %831
        %v834 = vrot.slane %v810, 6
        %835 = vrot.lane.b32.xlu0 %v834, 64
        %v836 = vpop.permute.xlu0 %835
        %v838 = vrot.slane %v810, 7
        %839 = vrot.lane.b32.xlu0 %v838, 96
        %v840 = vpop.permute.xlu0 %839
        %v842 = vsel %vm214, %v810, %v818
        %vm843 = vcmask 523264
        %v844 = vsel %vm843, %v842, %v822
        %vm845 = vcmask 785408
        %v846 = vsel %vm845, %v844, %v826
        %v847 = vsel %vm214, %v828, %v832
        %v848 = vsel %vm843, %v847, %v836
        %v849 = vsel %vm845, %v848, %v840
        %v852 = vcombine.low %v846, %v849
        %v854 = vunpack.c.l.s4 1966171168
        %v855 = vunpack.c.0.s8 %v854
        %v856 = vlaneseq
        %v857 = vshrl.u32 %v856, 7
        %v858 = vsub.s32 %v855, %v857
        %v859 = vrot.slane %v852, %v858
        %v861 = vunpack.c.l.s4 1966171168
        %v862 = vunpack.c.0.s8 %v861
        %v863 = vlaneseq
        %v864 = vshrl.u32 %v863, 7
        %v865 = vsub.s32 %v862, %v864
        %v866 = vrot.slane %v859, %v865
        %v868 = vlaneseq
        %vm869 = vcmp.ge.s32.totalorder %v868, 0
        %vm870 = vcmp.lt.s32.totalorder %v868, 256
        %vm871 = vmand %vm869, %vm870
        %872 = vst.msk [vmem:[%s161] sm:$0x3] %vm871, %v866
        %s873 = sand.u32 %s93, 1
        %s874 = scalar_lea.sflag [#allocation3], %s873
        %s875 = sand.u32 %s93, 1
        %s876 = smul.addr %s875, 2
        %s877 = scalar_lea.vmem [#allocation2], %s876
        // Predicated region
        $region33: #{tpu_custom_call.1} parent=31 // pred_check
          %p878 = pneg %p103
        $region34: #{tpu_custom_call.1} parent=31 // pred_check_branch
          %880 = sbr.rel (%p878) target = $region36
        $region35: #{tpu_custom_call.1} parent=31 // pred_region
          %s882 = ssub.s32 32, 32
          %883 = vsyncadd %s874, %s882
          %s884 = smul.addr %s17, 2
          %s885 = smul.addr %s884, 16
          %s886 = scalar_lea.hbm %s3, %s885
          %s888 = sshll.u32 %s877, 4
          %s889 = int_to_ptr.vmem [resolvable:$true] %s888
          %891 = dma.vmem_to_hbm [thread:$0]  %s889, 32, %s886, %s874
        $region36: #{tpu_custom_call.1} parent=31 // pred_fallthru
          _
      $region32: #{tpu_custom_call.1} parent=5 // pred_fallthru
        _
      %p892 = scmp.le.s32.totalorder 2, %s12
      // Predicated region
      $region37: #{tpu_custom_call.1} parent=5 // pred_check
        %p893 = pneg %p892
      $region38: #{tpu_custom_call.1} parent=5 // pred_check_branch
        %895 = sbr.rel (%p893) target = $region40
      $region39: #{tpu_custom_call.1} parent=5 // pred_region
        %s896 = ssub.s32 %s12, 2
        // Predicated region
        $region41: #{tpu_custom_call.1} parent=39 // pred_check
          %p897 = pneg %p109
        $region42: #{tpu_custom_call.1} parent=39 // pred_check_branch
          %899 = sbr.rel (%p897) target = $region44
        $region43: #{tpu_custom_call.1} parent=39 // pred_region
          %s900 = sand.u32 %s94, 1
          %s901 = scalar_lea.sflag [#allocation3], %s900
          %s902 = sand.u32 %s94, 1
          %s903 = smul.addr %s902, 2
          %s904 = scalar_lea.vmem [#allocation2], %s903
          %905 = dma.done %s901, 32
        $region44: #{tpu_custom_call.1} parent=39 // pred_fallthru
          _
      $region40: #{tpu_custom_call.1} parent=5 // pred_fallthru
        _
    $region6: #{tpu_custom_call.1} parent=1 // loop_footer
      %s16 = sadd.s32 1, %s12
    $region7: #{tpu_custom_call.1} parent=1 // loop_footer_branch
      %11 = sbr.rel target = $region3
    $region8: #{tpu_custom_call.1} parent=1 // loop_exit
      _
    %906 = vsyncpa [#allocation3], 1
    %s907 = scalar_lea.sflag [#allocation3], 1
    %908 = vsyncpa %s907, 1

</llo_original>
